<compile_context>
chip_gen: v6e
topology: v6e:2x2x1
jax: 0.10.0
libtpu: 0.0.40
codegen_flags: <defaults>
</compile_context>

<pallas_src>
import functools

import jax
import jax.numpy as jnp
from jax.experimental import pallas as pl
from jax.experimental.pallas import tpu as pltpu


def _round_up(v, m):
    return ((v + m - 1) // m) * m


def _num_tensorcores():
    """TensorCores per JAX device: 2 on megacore chips (v4/v5p, v7x), 1 on v5e/v6e."""
    try:
        kind = jax.devices()[0].device_kind.lower()
    except Exception:  # pragma: no cover - conservative fallback
        return 1
    if "lite" in kind or "v5e" in kind or "v6e" in kind:
        return 1
    if "v4" in kind or "v5" in kind or "v7" in kind:
        return 2
    return 1


def _gls_attn_kernel(x_ref, t_ref, out_ref, *,
                     n_valid, padding_idx, alpha, blocks_per_core):
    c = pl.program_id(0)      # core-split index ("parallel")
    i = pl.program_id(1)      # row-block index within this split ("arbitrary")

    @pl.when(i == 0)
    def _init():
        out_ref[...] = jnp.zeros_like(out_ref)

    x = x_ref[...].astype(jnp.float32)          # (TM, C) logits tile (identity cast for f32)
    t = t_ref[...]                              # (TM, 1) int32 targets
    tm, C = x.shape

    # Row-wise softmax statistics; softmax / log_softmax / true_dist never materialized.
    m = jnp.max(x, axis=-1, keepdims=True)                    # (TM, 1)
    e = jnp.exp(x - m)                                        # (TM, C)
    s = jnp.sum(e, axis=-1, keepdims=True)                    # (TM, 1); pmax == 1/s exactly
    logz = jnp.log(s) + m                                     # (TM, 1) logsumexp

    sum_x = jnp.sum(x, axis=-1, keepdims=True)                # (TM, 1)
    col = jax.lax.broadcasted_iota(jnp.int32, (tm, C), 1)
    x_t = jnp.sum(jnp.where(col == t, x, 0.0), axis=-1, keepdims=True)  # x[row, target]

    logp_t = x_t - logz                                       # log_softmax at target column
    sum_logp = sum_x - C * logz                               # sum_c log_softmax

    # Graduated smoothing: pmax >= 0.7 <=> s <= 1/0.7, pmax <= 0.3 <=> s >= 1/0.3
    # (exact equivalence, no divide; conditions are disjoint so order is irrelevant).
    smooth = jnp.where(s <= (1.0 / 0.7), 3.0 * alpha,
                       jnp.where(s >= (1.0 / 0.3), 0.0, alpha))   # (TM, 1)
    u = smooth * (1.0 / (C - 1))                              # off-target true_dist value
    conf = 1.0 - C * u                                        # scattered target value

    log_u = jnp.log(jnp.where(u > 0, u, 1.0))
    log_conf = jnp.log(jnp.where(conf > 0, conf, 1.0))

    # KLDivLoss(reduction='none') summed over classes; entries with true_dist <= 0 give 0.
    kl_off = jnp.where(u > 0, u * ((C - 1) * log_u - (sum_logp - logp_t)), 0.0)
    kl_tgt = jnp.where(conf > 0, conf * (log_conf - logp_t), 0.0)
    kl_row = kl_off + kl_tgt                                  # (TM, 1)

    # Mask: logical rows past N (ragged last block / clamped phantom blocks) and ignored
    # targets.  where-select, never a 0/1 multiply, so garbage rows cannot leak NaN/Inf.
    row0 = (c * blocks_per_core + i) * tm
    rows = row0 + jax.lax.broadcasted_iota(jnp.int32, (tm, 1), 0)
    keep = (rows < n_valid) & (t != padding_idx)

    kl_part = jnp.sum(jnp.where(keep, kl_row, 0.0), axis=0, keepdims=True)   # (1, 1)
    cnt_part = jnp.sum(jnp.where(keep, 1.0, 0.0), axis=0, keepdims=True)     # (1, 1)

    # Lane-dense accumulation into this split's resident (8, 128) output block:
    # [0, 0] = kl sum, [0, 1] = non-ignored row count.
    lane = jax.lax.broadcasted_iota(jnp.int32, (8, 128), 1)
    sub = jax.lax.broadcasted_iota(jnp.int32, (8, 128), 0)
    upd = jnp.where(lane == 0, kl_part, jnp.where(lane == 1, cnt_part, 0.0))
    out_ref[...] += jnp.where(sub == 0, upd, 0.0)


def graduated_label_smoothing_attn_loss(logits, targets, *,
                                        ignore_index=0, alpha=0.0,
                                        normalize_length=True,
                                        block_rows=None, num_splits=None):
    """Pallas implementation of GraduatedLabelSmoothingAttn.forward."""
    C = logits.shape[-1]
    batch_size = logits.shape[0]
    x = logits.reshape(-1, C)                   # native dtype; no upcast, no HBM pad copy
    t = targets.reshape(-1, 1).astype(jnp.int32)
    n = x.shape[0]

    in_itemsize = jnp.dtype(x.dtype).itemsize
    try:
        vmem_cap = int(pltpu.get_tpu_info().vmem_capacity_bytes)
    except Exception:  # pragma: no cover - conservative fallback
        vmem_cap = 64 * 1024 * 1024

    # Padded VMEM bytes per logical row (lane dim pads up to a multiple of 128).
    lanes = _round_up(C, 128)
    in_row = lanes * in_itemsize                # logits tile, per buffer
    f32_row = lanes * 4                         # one full-tile f32 temporary
    tgt_row = 128 * 4                           # (tm,1) int32 block pads to 128 lanes

    # Per-row working set: double-buffered logits + double-buffered targets + ~5 f32 temps.
    per_row = 2 * in_row + 2 * tgt_row + 5 * f32_row
    # Budget: <= 60% of reported VMEM and an absolute 40 MiB cap (safe on v7x's 64 MiB/TC
    # even if the capacity query reports a per-chip figure; still >1 MiB of logits/tile).
    vmem_budget = min(int(vmem_cap * 0.6), 40 * 1024 * 1024)

    if block_rows is None:
        tm = vmem_budget // max(per_row, 1)
        # Also cap the raw logits payload per tile (~16 MiB is far past the roofline knee).
        tm = min(tm, (16 * 1024 * 1024) // max(C * in_itemsize, 1))
    else:
        tm = int(block_rows)

    if tm >= n:
        tm = n                                   # single block: dims equal full array dims
    elif tm >= 128:
        tm = (tm // 128) * 128                   # lane/sublane friendly for any dtype
    else:
        tm = max(8, (tm // 8) * 8)

    blocks_total = -(-n // tm)
    if num_splits is None:
        num_splits = _num_tensorcores()
    num_splits = max(1, min(int(num_splits), blocks_total))
    blocks_per_core = -(-blocks_total // num_splits)
    last_block = blocks_total - 1

    def tile_index(c, i):
        # Clamp phantom trailing blocks of the last split onto the final real block;
        # their rows are masked inside the kernel via `rows < n`.
        return (jnp.minimum(c * blocks_per_core + i, last_block), 0)

    kernel = functools.partial(
        _gls_attn_kernel,
        n_valid=n, padding_idx=int(ignore_index), alpha=float(alpha),
        blocks_per_core=blocks_per_core)

    # Computed per-step VMEM requirement (+25% + 4 MiB headroom), never >85% of capacity.
    step_bytes = tm * per_row + num_splits * 8 * 128 * 4
    vmem_limit = int(min(vmem_cap * 0.85,
                         max(step_bytes * 1.25 + (4 << 20), 32 << 20)))

    out = pl.pallas_call(
        kernel,
        grid=(num_splits, blocks_per_core),
        in_specs=[
            pl.BlockSpec((tm, C), tile_index),
            pl.BlockSpec((tm, 1), tile_index),
        ],
        out_specs=pl.BlockSpec((8, 128), lambda c, i: (c, 0)),
        out_shape=jax.ShapeDtypeStruct((num_splits * 8, 128), jnp.float32),
        compiler_params=pltpu.CompilerParams(
            dimension_semantics=("parallel", "arbitrary"),
            vmem_limit_bytes=vmem_limit),
    )(x, t)

    acc = out.reshape(num_splits, 8, 128)
    kl_sum = jnp.sum(acc[:, 0, 0])
    kept = jnp.sum(acc[:, 0, 1])
    denom = kept if normalize_length else jnp.float32(batch_size)
    return kl_sum / denom


def _reference_loss(logits, targets, *, ignore_index=0, alpha=0.0,
                    normalize_length=True):
    """Pure-JAX reference matching the PyTorch module semantics."""
    C = logits.shape[-1]
    batch_size = logits.shape[0]
    x = logits.reshape(-1, C).astype(jnp.float32)
    t = targets.reshape(-1).astype(jnp.int32)

    p = jax.nn.softmax(x, axis=-1)
    pmax = p.max(axis=-1)
    smoothing = jnp.full((x.shape[0],), alpha, jnp.float32)
    smoothing = jnp.where(pmax >= 0.7, 3.0 * alpha, smoothing)
    smoothing = jnp.where(pmax <= 0.3, 0.0, smoothing)

    true_dist = jnp.broadcast_to((smoothing / (C - 1))[:, None], x.shape)
    confidence = 1.0 - true_dist.sum(-1)
    onehot = jax.nn.one_hot(t, C, dtype=bool)
    true_dist = jnp.where(onehot, confidence[:, None], true_dist)

    ignore = t == ignore_index
    total = x.shape[0] - jnp.sum(ignore)

    logp = jax.nn.log_softmax(x, axis=-1)
    safe_log = jnp.log(jnp.where(true_dist > 0, true_dist, 1.0))
    kl = jnp.where(true_dist > 0, true_dist * (safe_log - logp), 0.0)
    kl = jnp.where(ignore[:, None], 0.0, kl)

    denom = total if normalize_length else batch_size
    return jnp.sum(kl) / denom


if __name__ == "__main__":
    key = jax.random.PRNGKey(0)
    k1, k2, k3, k4 = jax.random.split(key, 4)

    ignore_index = 0
    alpha = 0.1

    # Test 1: small shapes from the module spec (single auto-sized block, phantom-split path).
    batch, seq, vocab = 2, 8, 32
    logits = 2.0 * jax.random.normal(k1, (batch, seq, vocab), dtype=jnp.float32)
    logits = logits.at[1, 3].multiply(6.0)      # push one row into the pmax >= 0.7 branch
    targets = jax.random.randint(k2, (batch, seq), 1, vocab, dtype=jnp.int32)
    targets = targets.at[0, 0].set(ignore_index)  # exercise the padding/ignore path

    loss = graduated_label_smoothing_attn_loss(
        logits, targets, ignore_index=ignore_index, alpha=alpha,
        normalize_length=True)
    loss = jax.block_until_ready(loss)
    ref = _reference_loss(logits, targets, ignore_index=ignore_index,
                          alpha=alpha, normalize_length=True)
    assert jnp.allclose(loss, ref, rtol=3e-5, atol=3e-5), (loss, ref)

    # Test 2: multi-block grid with a ragged last block (explicit block_rows), exercising
    # the resident accumulator, clamped phantom blocks and in-kernel row masking.
    b2, s2, v2 = 6, 350, 32                     # N = 2100 rows, block_rows=512 -> 5 blocks
    logits2 = 1.5 * jax.random.normal(k3, (b2, s2, v2), dtype=jnp.float32)
    targets2 = jax.random.randint(k4, (b2, s2), 0, v2, dtype=jnp.int32)

    loss2 = graduated_label_smoothing_attn_loss(
        logits2, targets2, ignore_index=ignore_index, alpha=alpha,
        normalize_length=True, block_rows=512)
    loss2 = jax.block_until_ready(loss2)
    ref2 = _reference_loss(logits2, targets2, ignore_index=ignore_index,
                           alpha=alpha, normalize_length=True)
    assert jnp.allclose(loss2, ref2, rtol=1e-4, atol=1e-4), (loss2, ref2)

    print("KERNEL_OK")
</pallas_src>

<mosaic_0001>
module attributes {stable_mosaic.version = 11 : i64} {
  func.func @_gls_attn_kernel(%arg0: i32, %arg1: i32, %arg2: memref<16x32xf32, #tpu.memory_space<vmem>>, %arg3: memref<16x1xi32, #tpu.memory_space<vmem>>, %arg4: memref<8x128xf32, #tpu.memory_space<vmem>>) attributes {dimension_semantics = [#tpu.dimension_semantics<parallel>, #tpu.dimension_semantics<arbitrary>], iteration_bounds = array<i64: 1, 1>, scalar_prefetch = 0 : i64, scratch_operands = 0 : i64, tpu.core_type = #tpu.core_type<tc>, window_params = [{transform_indices = @transform_0, window_bounds = array<i64: 16, 32>}, {transform_indices = @transform_1, window_bounds = array<i64: 16, 1>}, {transform_indices = @transform_2, window_bounds = array<i64: 8, 128>}]} {
    %c0_i32 = arith.constant 0 : i32
    %0 = arith.cmpi eq, %arg1, %c0_i32 : i32
    %1 = arith.extui %0 : i1 to i32
    %c0_i32_0 = arith.constant 0 : i32
    %2 = arith.cmpi ne, %1, %c0_i32_0 : i32
    scf.if %2 {
      %cst_42 = arith.constant 0.000000e+00 : f32
      %108 = vector.broadcast %cst_42 : f32 to vector<8x128xf32>
      %c0_43 = arith.constant 0 : index
      %c0_44 = arith.constant 0 : index
      %109 = vector.load %arg4[%c0_43, %c0_44] : memref<8x128xf32, #tpu.memory_space<vmem>>, vector<8x128xf32>
      tpu.vector_store %arg4[%c0_43, %c0_44], %108 {strides = array<i32>} : memref<8x128xf32, #tpu.memory_space<vmem>>, vector<8x128xf32>,
    } else {
    }
    %c0 = arith.constant 0 : index
    %c0_1 = arith.constant 0 : index
    %3 = vector.load %arg2[%c0, %c0_1] : memref<16x32xf32, #tpu.memory_space<vmem>>, vector<16x32xf32>
    %c0_2 = arith.constant 0 : index
    %c0_3 = arith.constant 0 : index
    %4 = vector.load %arg3[%c0_2, %c0_3] : memref<16x1xi32, #tpu.memory_space<vmem>>, vector<16x1xi32>
    %cst = arith.constant dense<0xFF800000> : vector<16xf32>
    %5 = vector.multi_reduction <maximumf>, %3, %cst [1] : vector<16x32xf32> to vector<16xf32>
    %6 = vector.shape_cast %5 : vector<16xf32> to vector<16x1xf32>
    %7 = vector.broadcast %6 : vector<16x1xf32> to vector<16x32xf32>
    %8 = arith.subf %3, %7 : vector<16x32xf32>
    %9 = math.exp %8 : vector<16x32xf32>
    %cst_4 = arith.constant dense<0.000000e+00> : vector<16xf32>
    %10 = vector.multi_reduction <add>, %9, %cst_4 [1] : vector<16x32xf32> to vector<16xf32>
    %11 = vector.shape_cast %10 : vector<16xf32> to vector<16x1xf32>
    %12 = math.log %11 : vector<16x1xf32>
    %13 = arith.addf %12, %6 : vector<16x1xf32>
    %cst_5 = arith.constant dense<0.000000e+00> : vector<16xf32>
    %14 = vector.multi_reduction <add>, %3, %cst_5 [1] : vector<16x32xf32> to vector<16xf32>
    %15 = vector.shape_cast %14 : vector<16xf32> to vector<16x1xf32>
    %16 = tpu.iota {dimensions = array<i32: 1>} : vector<16x32xi32>
    %17 = vector.broadcast %4 : vector<16x1xi32> to vector<16x32xi32>
    %18 = arith.cmpi eq, %16, %17 : vector<16x32xi32>
    %cst_6 = arith.constant 0.000000e+00 : f32
    %19 = vector.broadcast %cst_6 : f32 to vector<16x32xf32>
    %20 = arith.select %18, %3, %19 : vector<16x32xi1>, vector<16x32xf32>
    %cst_7 = arith.constant dense<0.000000e+00> : vector<16xf32>
    %21 = vector.multi_reduction <add>, %20, %cst_7 [1] : vector<16x32xf32> to vector<16xf32>
    %22 = vector.shape_cast %21 : vector<16xf32> to vector<16x1xf32>
    %23 = arith.subf %22, %13 : vector<16x1xf32>
    %cst_8 = arith.constant 3.200000e+01 : f32
    %24 = vector.broadcast %cst_8 : f32 to vector<16x1xf32>
    %25 = arith.mulf %24, %13 : vector<16x1xf32>
    %26 = arith.subf %15, %25 : vector<16x1xf32>
    %cst_9 = arith.constant 1.42857146 : f32
    %27 = vector.broadcast %cst_9 : f32 to vector<16x1xf32>
    %28 = arith.cmpf ole, %11, %27 : vector<16x1xf32>
    %cst_10 = arith.constant 3.33333325 : f32
    %29 = vector.broadcast %cst_10 : f32 to vector<16x1xf32>
    %30 = arith.cmpf oge, %11, %29 : vector<16x1xf32>
    %cst_11 = arith.constant 0.000000e+00 : f32
    %cst_12 = arith.constant 1.000000e-01 : f32
    %31 = vector.broadcast %cst_11 : f32 to vector<16x1xf32>
    %32 = vector.broadcast %cst_12 : f32 to vector<16x1xf32>
    %33 = arith.select %30, %31, %32 : vector<16x1xi1>, vector<16x1xf32>
    %cst_13 = arith.constant 3.000000e-01 : f32
    %34 = vector.broadcast %cst_13 : f32 to vector<16x1xf32>
    %35 = arith.select %28, %34, %33 : vector<16x1xi1>, vector<16x1xf32>
    %cst_14 = arith.constant 0.0322580636 : f32
    %36 = vector.broadcast %cst_14 : f32 to vector<16x1xf32>
    %37 = arith.mulf %35, %36 : vector<16x1xf32>
    %cst_15 = arith.constant 3.200000e+01 : f32
    %38 = vector.broadcast %cst_15 : f32 to vector<16x1xf32>
    %39 = arith.mulf %38, %37 : vector<16x1xf32>
    %cst_16 = arith.constant 1.000000e+00 : f32
    %40 = vector.broadcast %cst_16 : f32 to vector<16x1xf32>
    %41 = arith.subf %40, %39 : vector<16x1xf32>
    %cst_17 = arith.constant 0.000000e+00 : f32
    %42 = vector.broadcast %cst_17 : f32 to vector<16x1xf32>
    %43 = arith.cmpf ogt, %37, %42 : vector<16x1xf32>
    %cst_18 = arith.constant 1.000000e+00 : f32
    %44 = vector.broadcast %cst_18 : f32 to vector<16x1xf32>
    %45 = arith.select %43, %37, %44 : vector<16x1xi1>, vector<16x1xf32>
    %46 = math.log %45 : vector<16x1xf32>
    %cst_19 = arith.constant 0.000000e+00 : f32
    %47 = vector.broadcast %cst_19 : f32 to vector<16x1xf32>
    %48 = arith.cmpf ogt, %41, %47 : vector<16x1xf32>
    %cst_20 = arith.constant 1.000000e+00 : f32
    %49 = vector.broadcast %cst_20 : f32 to vector<16x1xf32>
    %50 = arith.select %48, %41, %49 : vector<16x1xi1>, vector<16x1xf32>
    %51 = math.log %50 : vector<16x1xf32>
    %cst_21 = arith.constant 0.000000e+00 : f32
    %52 = vector.broadcast %cst_21 : f32 to vector<16x1xf32>
    %53 = arith.cmpf ogt, %37, %52 : vector<16x1xf32>
    %cst_22 = arith.constant 3.100000e+01 : f32
    %54 = vector.broadcast %cst_22 : f32 to vector<16x1xf32>
    %55 = arith.mulf %54, %46 : vector<16x1xf32>
    %56 = arith.subf %26, %23 : vector<16x1xf32>
    %57 = arith.subf %55, %56 : vector<16x1xf32>
    %58 = arith.mulf %37, %57 : vector<16x1xf32>
    %cst_23 = arith.constant 0.000000e+00 : f32
    %59 = vector.broadcast %cst_23 : f32 to vector<16x1xf32>
    %60 = arith.select %53, %58, %59 : vector<16x1xi1>, vector<16x1xf32>
    %cst_24 = arith.constant 0.000000e+00 : f32
    %61 = vector.broadcast %cst_24 : f32 to vector<16x1xf32>
    %62 = arith.cmpf ogt, %41, %61 : vector<16x1xf32>
    %63 = arith.subf %51, %23 : vector<16x1xf32>
    %64 = arith.mulf %41, %63 : vector<16x1xf32>
    %cst_25 = arith.constant 0.000000e+00 : f32
    %65 = vector.broadcast %cst_25 : f32 to vector<16x1xf32>
    %66 = arith.select %62, %64, %65 : vector<16x1xi1>, vector<16x1xf32>
    %67 = arith.addf %60, %66 : vector<16x1xf32>
    %c1_i32 = arith.constant 1 : i32
    %68 = arith.muli %arg0, %c1_i32 : i32
    %69 = arith.addi %68, %arg1 : i32
    %c16_i32 = arith.constant 16 : i32
    %70 = arith.muli %69, %c16_i32 : i32
    %71 = tpu.iota {dimensions = array<i32: 0>} : vector<16x1xi32>
    %72 = vector.broadcast %70 : i32 to vector<16x1xi32>
    %73 = arith.addi %72, %71 : vector<16x1xi32>
    %c16_i32_26 = arith.constant 16 : i32
    %74 = vector.broadcast %c16_i32_26 : i32 to vector<16x1xi32>
    %75 = arith.cmpi slt, %73, %74 : vector<16x1xi32>
    %c0_i32_27 = arith.constant 0 : i32
    %76 = vector.broadcast %c0_i32_27 : i32 to vector<16x1xi32>
    %77 = arith.cmpi ne, %4, %76 : vector<16x1xi32>
    %78 = arith.andi %75, %77 : vector<16x1xi1>
    %cst_28 = arith.constant 0.000000e+00 : f32
    %79 = vector.broadcast %cst_28 : f32 to vector<16x1xf32>
    %80 = arith.select %78, %67, %79 : vector<16x1xi1>, vector<16x1xf32>
    %cst_29 = arith.constant dense<0.000000e+00> : vector<1xf32>
    %81 = vector.multi_reduction <add>, %80, %cst_29 [0] : vector<16x1xf32> to vector<1xf32>
    %82 = vector.shape_cast %81 : vector<1xf32> to vector<1x1xf32>
    %cst_30 = arith.constant 1.000000e+00 : f32
    %cst_31 = arith.constant 0.000000e+00 : f32
    %83 = vector.broadcast %cst_30 : f32 to vector<16x1xf32>
    %84 = vector.broadcast %cst_31 : f32 to vector<16x1xf32>
    %85 = arith.select %78, %83, %84 : vector<16x1xi1>, vector<16x1xf32>
    %cst_32 = arith.constant dense<0.000000e+00> : vector<1xf32>
    %86 = vector.multi_reduction <add>, %85, %cst_32 [0] : vector<16x1xf32> to vector<1xf32>
    %87 = vector.shape_cast %86 : vector<1xf32> to vector<1x1xf32>
    %88 = tpu.iota {dimensions = array<i32: 1>} : vector<8x128xi32>
    %89 = tpu.iota {dimensions = array<i32: 0>} : vector<8x128xi32>
    %c0_i32_33 = arith.constant 0 : i32
    %90 = vector.broadcast %c0_i32_33 : i32 to vector<8x128xi32>
    %91 = arith.cmpi eq, %88, %90 : vector<8x128xi32>
    %c1_i32_34 = arith.constant 1 : i32
    %92 = vector.broadcast %c1_i32_34 : i32 to vector<8x128xi32>
    %93 = arith.cmpi eq, %88, %92 : vector<8x128xi32>
    %cst_35 = arith.constant 0.000000e+00 : f32
    %94 = vector.shape_cast %87 : vector<1x1xf32> to vector<1x1xf32>
    %95 = vector.broadcast %94 : vector<1x1xf32> to vector<8x128xf32>
    %96 = vector.broadcast %cst_35 : f32 to vector<8x128xf32>
    %97 = arith.select %93, %95, %96 : vector<8x128xi1>, vector<8x128xf32>
    %98 = vector.shape_cast %82 : vector<1x1xf32> to vector<1x1xf32>
    %99 = vector.broadcast %98 : vector<1x1xf32> to vector<8x128xf32>
    %100 = arith.select %91, %99, %97 : vector<8x128xi1>, vector<8x128xf32>
    %c0_36 = arith.constant 0 : index
    %c0_37 = arith.constant 0 : index
    %101 = vector.load %arg4[%c0_36, %c0_37] : memref<8x128xf32, #tpu.memory_space<vmem>>, vector<8x128xf32>
    %c0_i32_38 = arith.constant 0 : i32
    %102 = vector.broadcast %c0_i32_38 : i32 to vector<8x128xi32>
    %103 = arith.cmpi eq, %89, %102 : vector<8x128xi32>
    %cst_39 = arith.constant 0.000000e+00 : f32
    %104 = vector.broadcast %cst_39 : f32 to vector<8x128xf32>
    %105 = arith.select %103, %100, %104 : vector<8x128xi1>, vector<8x128xf32>
    %106 = arith.addf %101, %105 : vector<8x128xf32>
    %c0_40 = arith.constant 0 : index
    %c0_41 = arith.constant 0 : index
    %107 = vector.load %arg4[%c0_40, %c0_41] : memref<8x128xf32, #tpu.memory_space<vmem>>, vector<8x128xf32>
    tpu.vector_store %arg4[%c0_40, %c0_41], %106 {strides = array<i32>} : memref<8x128xf32, #tpu.memory_space<vmem>>, vector<8x128xf32>,
    return
  }
  func.func @transform_0(%arg0: i32, %arg1: i32) -> (i32, i32) {
    %c1_i32 = arith.constant 1 : i32
    %0 = arith.muli %arg0, %c1_i32 : i32
    %1 = arith.addi %0, %arg1 : i32
    %c0_i32 = arith.constant 0 : i32
    %2 = arith.minsi %1, %c0_i32 : i32
    %c0_i32_0 = arith.constant 0 : i32
    %c0_i32_1 = arith.constant 0 : i32
    return %2, %c0_i32_0 : i32, i32
  }
  func.func @transform_1(%arg0: i32, %arg1: i32) -> (i32, i32) {
    %c1_i32 = arith.constant 1 : i32
    %0 = arith.muli %arg0, %c1_i32 : i32
    %1 = arith.addi %0, %arg1 : i32
    %c0_i32 = arith.constant 0 : i32
    %2 = arith.minsi %1, %c0_i32 : i32
    %c0_i32_0 = arith.constant 0 : i32
    %c0_i32_1 = arith.constant 0 : i32
    return %2, %c0_i32_0 : i32, i32
  }
  func.func @transform_2(%arg0: i32, %arg1: i32) -> (i32, i32) {
    %c0_i32 = arith.constant 0 : i32
    %c0_i32_0 = arith.constant 0 : i32
    return %arg0, %c0_i32 : i32, i32
  }
}

</mosaic_0001>

<llo_original>
// kernel: tpu_custom_call.1
$region0: #{tpu_custom_call.1}
  #allocation0 [shape = 'u32[]', space=smem, size = 0x4, offset = 0x4, fixed_abs, tag = 'smem constant byte address 0x4 - core index']
  #allocation1 [shape = 'u32[144,128]{1,0:T(1,128)}', space=vmem, size = 0x12000, scoped, tag = 'internal scratch']
  %s0 = inlined_call_operand.vmem [shape: f32[16,32], index: 0, kind: input, shape index: {}]
  %s1 = inlined_call_operand.vmem [shape: s32[16,1], index: 1, kind: input, shape index: {}]
  %s2 = inlined_call_operand.hbm [shape: f32[8,128], index: 2, kind: output, shape index: {}]
  %s3 = sld [smem:[#allocation0]]
  $region22: #{tpu_custom_call.1} parent=0
    _
  %s5 = ssub.s32 1, %s3
  %s6 = scalar_select 0, %s5, %s3
  $region1: #{tpu_custom_call.1} parent=0
    #allocation2 [shape = 'u8[4096]{0}', space=vmem, size = 0x1000, scoped, tag = 'output window, operand 0, single buffered']
    #allocation3 [shape = 's32[1]{0}', space=sflag, size = 0x4, scoped, tag = 'scoped memory for tpu_custom_call.1']
    %7 = vsyncpa [#allocation3], 0
    // Predicated region
    $region2: #{tpu_custom_call.1} parent=1 // pred_check
      _
    $region3: #{tpu_custom_call.1} parent=1 // pred_check_branch
      %9 = sbr.rel (0) target = $region5
    $region4: #{tpu_custom_call.1} parent=1 // pred_region
      %s10 = sadd.s32 0, 0
      %p11 = scmp.lt.s32.totalorder %s10, 0
      %s12 = scalar_select %p11, %s10, 0
      %s13 = smul.u32 2, %s12
      %p14 = scmp.lt.s32.totalorder %s13, 1
      %s15 = scalar_select %p14, %s13, 1
      %s16 = smul.addr %s15, 8
      %s17 = scalar_lea.vmem %s0, %s16
      %s18 = sadd.s32 0, 0
      %p19 = scmp.lt.s32.totalorder %s18, 0
      %s20 = scalar_select %p19, %s18, 0
      %s21 = smul.u32 2, %s20
    $region5: #{tpu_custom_call.1} parent=1 // pred_fallthru
      _
    // Predicated region
    $region6: #{tpu_custom_call.1} parent=1 // pred_check
      _
    $region7: #{tpu_custom_call.1} parent=1 // pred_check_branch
      %23 = sbr.rel (0) target = $region9
    $region8: #{tpu_custom_call.1} parent=1 // pred_region
      %s24 = sadd.s32 0, 0
      %p25 = scmp.lt.s32.totalorder %s24, 0
      %s26 = scalar_select %p25, %s24, 0
      %s27 = smul.u32 2, %s26
      %p28 = scmp.lt.s32.totalorder %s27, 1
      %s29 = scalar_select %p28, %s27, 1
      %s30 = smul.addr %s29, 8
      %s31 = scalar_lea.vmem %s1, %s30
      %s32 = sadd.s32 0, 0
      %p33 = scmp.lt.s32.totalorder %s32, 0
      %s34 = scalar_select %p33, %s32, 0
      %s35 = smul.u32 2, %s34
    $region9: #{tpu_custom_call.1} parent=1 // pred_fallthru
      _
    %s36 = sadd.s32 0, 0
    %p37 = scmp.lt.s32.totalorder %s36, 0
    %s38 = scalar_select %p37, %s36, 0
    %s39 = smul.u32 2, %s38
    %p40 = scmp.lt.s32.totalorder %s39, 1
    %s41 = scalar_select %p40, %s39, 1
    %s42 = smul.addr %s41, 8
    %s43 = scalar_lea.vmem %s0, %s42
    %s44 = sadd.s32 0, 0
    %p45 = scmp.lt.s32.totalorder %s44, 0
    %s46 = scalar_select %p45, %s44, 0
    %s47 = smul.u32 2, %s46
    %p48 = scmp.lt.s32.totalorder %s47, 1
    %s49 = scalar_select %p48, %s47, 1
    %s50 = smul.addr %s49, 8
    %s51 = scalar_lea.vmem %s1, %s50
    %s52 = sadd.s32 0, 0
    %p53 = scmp.lt.s32.totalorder %s52, 0
    %s54 = scalar_select %p53, %s52, 0
    %s55 = smul.u32 2, %s54
    %p56 = scmp.lt.s32.totalorder %s55, 1
    %s57 = scalar_select %p56, %s55, 1
    %s58 = smul.addr %s57, 8
    %s59 = scalar_lea.vmem %s0, %s58
    %s60 = sadd.s32 0, 0
    %p61 = scmp.lt.s32.totalorder %s60, 0
    %s62 = scalar_select %p61, %s60, 0
    %s63 = smul.u32 2, %s62
    %s64 = sadd.s32 0, 0
    %p65 = scmp.lt.s32.totalorder %s64, 0
    %s66 = scalar_select %p65, %s64, 0
    %s67 = smul.u32 2, %s66
    %p68 = scmp.lt.s32.totalorder %s67, 1
    %s69 = scalar_select %p68, %s67, 1
    %s70 = smul.addr %s69, 8
    %s71 = scalar_lea.vmem %s1, %s70
    %s72 = sadd.s32 0, 0
    %p73 = scmp.lt.s32.totalorder %s72, 0
    %s74 = scalar_select %p73, %s72, 0
    %s75 = smul.u32 2, %s74
    %p76 = scmp.eq.s32.totalorder 0, 0
    // Predicated region
    $region10: #{tpu_custom_call.1} parent=1 // pred_check
      %p77 = pneg %p76
    $region11: #{tpu_custom_call.1} parent=1 // pred_check_branch
      %79 = sbr.rel (%p77) target = $region13
    $region12: #{tpu_custom_call.1} parent=1 // pred_region
      %80 = vst [vmem:[#allocation2] sm:$0xff] 0.0
    $region13: #{tpu_custom_call.1} parent=1 // pred_fallthru
      _
    %v81 = vld [vmem:[%s59] sm:$0xff]
    %v82 = vld [vmem:[%s59 + $0x8] sm:$0xff]
    %v83 = vld [vmem:[%s71] sm:$0xff]
    %v84 = vld [vmem:[%s71 + $0x8] sm:$0xff]
    %vm85 = vcmask 261120
    %v86 = vsel %vm85, %v81, -inf
    %87 = vmax.xlane.f32.xlu0 %v86
    %v88 = vpop.xlane.xlu0 %87
    %v89 = vsel %vm85, %v82, -inf
    %90 = vmax.xlane.f32.xlu0 %v89
    %v91 = vpop.xlane.xlu0 %90
    %v92 = vsub.f32 %v81, %v88
    %v93 = vsub.f32 %v82, %v91
    %v94 = vmul.f32 %v92, 1.442695
    %v95 = vpow.pop %v94
    %v96 = vmul.f32 %v93, 1.442695
    %v97 = vpow.pop %v96
    %v98 = vsel %vm85, %v95, 0.0
    %99 = vadd.xlane.f32.xlu0 %v98
    %v100 = vpop.xlane.xlu0 %99
    %v101 = vsel %vm85, %v97, 0.0
    %102 = vadd.xlane.f32.xlu0 %v101
    %v103 = vpop.xlane.xlu0 %102
    %v104 = vlog2.pop %v100
    %v105 = vmul.f32 %v104, 0.6931472
    %v106 = vlog2.pop %v103
    %v107 = vmul.f32 %v106, 0.6931472
    %v108 = vadd.f32 %v105, %v88
    %v109 = vadd.f32 %v107, %v91
    %v110 = vsel %vm85, %v81, 0.0
    %111 = vadd.xlane.f32.xlu0 %v110
    %v112 = vpop.xlane.xlu0 %111
    %v113 = vsel %vm85, %v82, 0.0
    %114 = vadd.xlane.f32.xlu0 %v113
    %v115 = vpop.xlane.xlu0 %114
    %v116 = vlaneseq
    %v117 = vand.u32 %v116, 127
    %118 = vset.pattern.permute.xlu0 0
    %119 = vperm.xlu0 %118, %v83
    %v120 = vpop.permute.xlu0 %119
    %121 = vset.pattern.permute.xlu0 0
    %122 = vperm.xlu0 %121, %v84
    %v123 = vpop.permute.xlu0 %122
    %vm124 = vcmp.eq.s32.totalorder %v117, %v120
    %vm125 = vcmp.eq.s32.totalorder %v117, %v123
    %v126 = vsel %vm124, %v81, 0.0
    %v127 = vsel %vm125, %v82, 0.0
    %v128 = vsel %vm85, %v126, 0.0
    %129 = vadd.xlane.f32.xlu0 %v128
    %v130 = vpop.xlane.xlu0 %129
    %v131 = vsel %vm85, %v127, 0.0
    %132 = vadd.xlane.f32.xlu0 %v131
    %v133 = vpop.xlane.xlu0 %132
    %v134 = vsub.f32 %v130, %v108
    %v135 = vsub.f32 %v133, %v109
    %v136 = vmul.f32 %v108, 32.0
    %v137 = vmul.f32 %v109, 32.0
    %v138 = vsub.f32 %v112, %v136
    %v139 = vsub.f32 %v115, %v137
    %vm140 = vcmp.le.f32.partialorder %v100, 1.4285715
    %vm141 = vcmp.le.f32.partialorder %v103, 1.4285715
    %vm142 = vcmp.ge.f32.partialorder %v100, 3.3333333
    %vm143 = vcmp.ge.f32.partialorder %v103, 3.3333333
    %v144 = vsel %vm142, 0.0, 0.1
    %v145 = vsel %vm143, 0.0, 0.1
    %v146 = vsel %vm140, 0.3, %v144
    %v147 = vsel %vm141, 0.3, %v145
    %v148 = vmul.f32 %v146, 0.032258064
    %v149 = vmul.f32 %v147, 0.032258064
    %v150 = vmul.f32 %v148, 32.0
    %v151 = vmul.f32 %v149, 32.0
    %v152 = vsub.f32 1.0, %v150
    %v153 = vsub.f32 1.0, %v151
    %vm154 = vcmp.gt.f32.partialorder %v148, 0.0
    %vm155 = vcmp.gt.f32.partialorder %v149, 0.0
    %v156 = vsel %vm154, %v148, 1.0
    %v157 = vsel %vm155, %v149, 1.0
    %v158 = vlog2.pop %v156
    %v159 = vmul.f32 %v158, 0.6931472
    %v160 = vlog2.pop %v157
    %v161 = vmul.f32 %v160, 0.6931472
    %vm162 = vcmp.gt.f32.partialorder %v152, 0.0
    %vm163 = vcmp.gt.f32.partialorder %v153, 0.0
    %v164 = vsel %vm162, %v152, 1.0
    %v165 = vsel %vm163, %v153, 1.0
    %v166 = vlog2.pop %v164
    %v167 = vmul.f32 %v166, 0.6931472
    %v168 = vlog2.pop %v165
    %v169 = vmul.f32 %v168, 0.6931472
    %v170 = vmul.f32 %v159, 31.0
    %v171 = vmul.f32 %v161, 31.0
    %v172 = vsub.f32 %v138, %v134
    %v173 = vsub.f32 %v139, %v135
    %v174 = vsub.f32 %v170, %v172
    %v175 = vsub.f32 %v171, %v173
    %v176 = vmul.f32 %v148, %v174
    %v177 = vmul.f32 %v149, %v175
    %v178 = vsel %vm154, %v176, 0.0
    %v179 = vsel %vm155, %v177, 0.0
    %v180 = vsub.f32 %v167, %v134
    %v181 = vsub.f32 %v169, %v135
    %v182 = vmul.f32 %v152, %v180
    %v183 = vmul.f32 %v153, %v181
    %v184 = vsel %vm162, %v182, 0.0
    %v185 = vsel %vm163, %v183, 0.0
    %v186 = vadd.f32 %v178, %v184
    %v187 = vadd.f32 %v179, %v185
    %s188 = sadd.s32 0, 0
    %s189 = smul.u32 %s188, 16
    %v190 = vlaneseq
    %v191 = vshrl.u32 %v190, 7
    %v192 = vadd.s32 %v191, 8
    %v193 = vstv %s189
    %v194 = vadd.s32 %v193, %v191
    %v195 = vadd.s32 %v193, %v192
    %vm196 = vcmp.lt.s32.totalorder %v194, 16
    %vm197 = vcmp.lt.s32.totalorder %v195, 16
    %vm198 = vcmp.ne.s32.totalorder %v83, 0
    %vm199 = vcmp.ne.s32.totalorder %v84, 0
    %vm200 = vmand %vm196, %vm198
    %vm201 = vmand %vm197, %vm199
    %v202 = vsel %vm200, %v186, 0.0
    %v203 = vsel %vm201, %v187, 0.0
    %vm204 = vcmask 7168
    %v205 = vsel %vm204, %v202, 0.0
    %v206 = vsel %vm204, %v203, 0.0
    %v207 = vadd.f32 %v205, %v206
    %v208 = vrot.slane %v207, 4
    %v209 = vadd.f32 %v207, %v208
    %v210 = vrot.slane %v209, 2
    %v211 = vadd.f32 %v209, %v210
    %v212 = vrot.slane %v211, 1
    %v213 = vadd.f32 %v211, %v212
    %v214 = vsel %vm200, 1.0, 0.0
    %v215 = vsel %vm201, 1.0, 0.0
    %v216 = vsel %vm204, %v214, 0.0
    %v217 = vsel %vm204, %v215, 0.0
    %v218 = vadd.f32 %v216, %v217
    %v219 = vrot.slane %v218, 4
    %v220 = vadd.f32 %v218, %v219
    %v221 = vrot.slane %v220, 2
    %v222 = vadd.f32 %v220, %v221
    %v223 = vrot.slane %v222, 1
    %v224 = vadd.f32 %v222, %v223
    %vm225 = vcmp.eq.s32.totalorder %v117, 0
    %vm226 = vcmp.eq.s32.totalorder %v117, 1
    %228 = vset.pattern.permute.xlu0 0
    %229 = vperm.xlu0 %228, %v224
    %v230 = vpop.permute.xlu0 %229
    %v232 = vsel %vm226, %v230, 0.0
    %234 = vset.pattern.permute.xlu0 0
    %235 = vperm.xlu0 %234, %v213
    %v236 = vpop.permute.xlu0 %235
    %v238 = vsel %vm225, %v236, %v232
    %v239 = vld [vmem:[#allocation2] sm:$0xff]
    %vm240 = vcmp.eq.s32.totalorder %v191, 0
    %v241 = vsel %vm240, %v238, 0.0
    %v242 = vadd.f32 %v239, %v241
    %243 = vst [vmem:[#allocation2] sm:$0xff] %v242
    // Predicated region
    $region14: #{tpu_custom_call.1} parent=1 // pred_check
      _
    $region15: #{tpu_custom_call.1} parent=1 // pred_check_branch
      %245 = sbr.rel (0) target = $region17
    $region16: #{tpu_custom_call.1} parent=1 // pred_region
      %s247 = ssub.s32 128, 128
      %248 = vsyncadd [#allocation3], %s247
      %s250 = sshll.u32 [#allocation2], 4
      %s251 = int_to_ptr.vmem [resolvable:$true] %s250
      %253 = dma.vmem_to_hbm [thread:$0]  %s251, 128, %s2, [#allocation3]
    $region17: #{tpu_custom_call.1} parent=1 // pred_fallthru
      _
    // Predicated region
    $region18: #{tpu_custom_call.1} parent=1 // pred_check
      _
    $region19: #{tpu_custom_call.1} parent=1 // pred_check_branch
      %255 = sbr.rel (0) target = $region21
    $region20: #{tpu_custom_call.1} parent=1 // pred_region
      %256 = dma.done [#allocation3], 128
    $region21: #{tpu_custom_call.1} parent=1 // pred_fallthru
      _
    %257 = vsyncpa [#allocation3], 1

</llo_original>
